<compile_context>
chip_gen: v5e
topology: v5e:2x2
jax: 0.10.0
libtpu: 0.0.40
codegen_flags: <defaults>
</compile_context>

<pallas_src>
from functools import partial

import jax
import jax.numpy as jnp
from jax.experimental import pallas as pl
from jax.experimental.pallas import tpu as pltpu


def _concat_dot_kernel(m_head_ref, m_tail_ref, head_ref, tail_ref, out_ref, *, scaling):
    """out[b, n] = scaling * (head[b,n,:]@m_head[b,:] + tail[b,n,:]@m_tail[b,:])."""
    h = head_ref[...]                       # (TB, TN, D)
    t = tail_ref[...]                       # (TB, TN, D)
    mh = m_head_ref[...][:, None, :]        # (TB, 1, D)
    mt = m_tail_ref[...][:, None, :]        # (TB, 1, D)

    # Elementwise multiply (VPU) + lane reduce (XLU); accumulate in f32.
    acc = jnp.sum(h * mh, axis=-1, dtype=jnp.float32)
    acc = acc + jnp.sum(t * mt, axis=-1, dtype=jnp.float32)
    out_ref[...] = (jnp.float32(scaling) * acc).astype(out_ref.dtype)


def _choose_tiles(B, N, D, itemsize):
    """Pick (TILE_B, TILE_N) that are (8,128)-friendly and VMEM-safe."""
    tile_b = B if B <= 8 else 8
    if N <= 128:
        tile_n = N                          # equal to full dim: always legal
    else:
        # ~<=2 MiB per head/tail tile; x2 inputs x2 pipeline buffers ~= 8 MiB,
        # which fits even v5e's 16 MiB default scoped-VMEM limit and leaves
        # plenty of headroom on v7x's 64 MiB physical VMEM.
        target_bytes = 2 * 1024 * 1024
        tile_n = max(128, min(N, target_bytes // max(1, tile_b * D * itemsize)))
        tile_n = (tile_n // 128) * 128      # lane-dense output stores
        tile_n = max(128, min(tile_n, 2048))
    return tile_b, tile_n


def concat_dot(mention, head, tail):
    """Pallas wrapper. mention: (B, 2D), head/tail: (B, N, D) -> (B, N)."""
    B, N, D = head.shape
    assert tail.shape == (B, N, D)
    assert mention.shape == (B, 2 * D)
    scaling = float((2 * D) ** -0.5)

    # Split mention outside the kernel (free layout plumbing; avoids a
    # non-128-aligned lane slice per grid step inside the kernel).
    m_head = mention[:, :D]
    m_tail = mention[:, D:]

    itemsize = jnp.dtype(head.dtype).itemsize
    tile_b, tile_n = _choose_tiles(B, N, D, itemsize)
    grid = (pl.cdiv(B, tile_b), pl.cdiv(N, tile_n))

    out_bytes = B * N * itemsize
    cost = pl.CostEstimate(
        flops=4 * B * N * D,
        transcendentals=0,
        bytes_accessed=head.nbytes + tail.nbytes + mention.nbytes + out_bytes,
    )

    return pl.pallas_call(
        partial(_concat_dot_kernel, scaling=scaling),
        out_shape=jax.ShapeDtypeStruct((B, N), head.dtype),
        grid=grid,
        in_specs=[
            # mention halves stay resident across the N-tile axis (constant j).
            pl.BlockSpec((tile_b, D), lambda i, j: (i, 0)),
            pl.BlockSpec((tile_b, D), lambda i, j: (i, 0)),
            pl.BlockSpec((tile_b, tile_n, D), lambda i, j: (i, j, 0)),
            pl.BlockSpec((tile_b, tile_n, D), lambda i, j: (i, j, 0)),
        ],
        out_specs=pl.BlockSpec((tile_b, tile_n), lambda i, j: (i, j)),
        compiler_params=pltpu.CompilerParams(
            dimension_semantics=("parallel", "parallel"),
            vmem_limit_bytes=32 * 1024 * 1024,
        ),
        cost_estimate=cost,
    )(m_head, m_tail, head, tail)


def concat_dot_ref(mention, head, tail):
    """Pure-JAX reference mirroring the PyTorch forward."""
    D = head.shape[-1]
    scaling = (2 * D) ** -0.5
    head_tail = jnp.concatenate([head, tail], axis=-1)      # (B, N, 2D)
    return scaling * jnp.einsum("bnk,bk->bn", head_tail, mention)


def _check(B, N, D, key, dtype=jnp.float32):
    k_m, k_h, k_t = jax.random.split(key, 3)
    mention = jax.random.normal(k_m, (B, 2 * D), dtype=dtype)
    head = jax.random.normal(k_h, (B, N, D), dtype=dtype)
    tail = jax.random.normal(k_t, (B, N, D), dtype=dtype)

    out = jax.block_until_ready(concat_dot(mention, head, tail))
    ref = concat_dot_ref(mention, head, tail)
    assert out.shape == (B, N), out.shape
    assert jnp.allclose(out, ref, atol=1e-4, rtol=1e-4), (
        f"mismatch vs reference at B={B}, N={N}, D={D}")


if __name__ == "__main__":
    key = jax.random.PRNGKey(0)
    k0, k1, k2 = jax.random.split(key, 3)
    # Small shape implied by the module: batch=2, candidates N=8, entity_dim=32.
    _check(2, 8, 32, k0)
    # Multi-tile grid (even division) and uneven N (partial last tile).
    _check(2, 4096, 32, k1)
    _check(3, 520, 64, k2)
    print("KERNEL_OK")
</pallas_src>

<mosaic_0001>
module attributes {stable_mosaic.version = 11 : i64} {
  func.func @_concat_dot_kernel(%arg0: i32, %arg1: i32, %arg2: memref<2x32xf32, #tpu.memory_space<vmem>>, %arg3: memref<2x32xf32, #tpu.memory_space<vmem>>, %arg4: memref<2x8x32xf32, #tpu.memory_space<vmem>>, %arg5: memref<2x8x32xf32, #tpu.memory_space<vmem>>, %arg6: memref<2x8xf32, #tpu.memory_space<vmem>>) attributes {dimension_semantics = [#tpu.dimension_semantics<parallel>, #tpu.dimension_semantics<parallel>], iteration_bounds = array<i64: 1, 1>, scalar_prefetch = 0 : i64, scratch_operands = 0 : i64, tpu.core_type = #tpu.core_type<tc>, window_params = [{transform_indices = @transform_0, window_bounds = array<i64: 2, 32>}, {transform_indices = @transform_1, window_bounds = array<i64: 2, 32>}, {transform_indices = @transform_2, window_bounds = array<i64: 2, 8, 32>}, {transform_indices = @transform_3, window_bounds = array<i64: 2, 8, 32>}, {transform_indices = @transform_4, window_bounds = array<i64: 2, 8>}]} {
    %c0 = arith.constant 0 : index
    %c0_0 = arith.constant 0 : index
    %c0_1 = arith.constant 0 : index
    %0 = vector.load %arg4[%c0, %c0_0, %c0_1] : memref<2x8x32xf32, #tpu.memory_space<vmem>>, vector<2x8x32xf32>
    %c0_2 = arith.constant 0 : index
    %c0_3 = arith.constant 0 : index
    %c0_4 = arith.constant 0 : index
    %1 = vector.load %arg5[%c0_2, %c0_3, %c0_4] : memref<2x8x32xf32, #tpu.memory_space<vmem>>, vector<2x8x32xf32>
    %c0_5 = arith.constant 0 : index
    %c0_6 = arith.constant 0 : index
    %2 = vector.load %arg2[%c0_5, %c0_6] : memref<2x32xf32, #tpu.memory_space<vmem>>, vector<2x32xf32>
    %3 = vector.shape_cast %2 : vector<2x32xf32> to vector<2x1x32xf32>
    %c0_7 = arith.constant 0 : index
    %c0_8 = arith.constant 0 : index
    %4 = vector.load %arg3[%c0_7, %c0_8] : memref<2x32xf32, #tpu.memory_space<vmem>>, vector<2x32xf32>
    %5 = vector.shape_cast %4 : vector<2x32xf32> to vector<2x1x32xf32>
    %6 = vector.broadcast %3 : vector<2x1x32xf32> to vector<2x8x32xf32>
    %7 = arith.mulf %0, %6 : vector<2x8x32xf32>
    %cst = arith.constant dense<0.000000e+00> : vector<2x8xf32>
    %8 = vector.multi_reduction <add>, %7, %cst [2] : vector<2x8x32xf32> to vector<2x8xf32>
    %9 = vector.broadcast %5 : vector<2x1x32xf32> to vector<2x8x32xf32>
    %10 = arith.mulf %1, %9 : vector<2x8x32xf32>
    %cst_9 = arith.constant dense<0.000000e+00> : vector<2x8xf32>
    %11 = vector.multi_reduction <add>, %10, %cst_9 [2] : vector<2x8x32xf32> to vector<2x8xf32>
    %12 = arith.addf %8, %11 : vector<2x8xf32>
    %cst_10 = arith.constant 1.250000e-01 : f32
    %13 = vector.broadcast %cst_10 : f32 to vector<2x8xf32>
    %14 = arith.mulf %13, %12 : vector<2x8xf32>
    %c0_11 = arith.constant 0 : index
    %c0_12 = arith.constant 0 : index
    %15 = vector.load %arg6[%c0_11, %c0_12] : memref<2x8xf32, #tpu.memory_space<vmem>>, vector<2x8xf32>
    tpu.vector_store %arg6[%c0_11, %c0_12], %14 {strides = array<i32>} : memref<2x8xf32, #tpu.memory_space<vmem>>, vector<2x8xf32>,
    return
  }
  func.func @transform_0(%arg0: i32, %arg1: i32) -> (i32, i32) {
    %c0_i32 = arith.constant 0 : i32
    %c0_i32_0 = arith.constant 0 : i32
    return %arg0, %c0_i32 : i32, i32
  }
  func.func @transform_1(%arg0: i32, %arg1: i32) -> (i32, i32) {
    %c0_i32 = arith.constant 0 : i32
    %c0_i32_0 = arith.constant 0 : i32
    return %arg0, %c0_i32 : i32, i32
  }
  func.func @transform_2(%arg0: i32, %arg1: i32) -> (i32, i32, i32) {
    %c0_i32 = arith.constant 0 : i32
    %c0_i32_0 = arith.constant 0 : i32
    return %arg0, %arg1, %c0_i32 : i32, i32, i32
  }
  func.func @transform_3(%arg0: i32, %arg1: i32) -> (i32, i32, i32) {
    %c0_i32 = arith.constant 0 : i32
    %c0_i32_0 = arith.constant 0 : i32
    return %arg0, %arg1, %c0_i32 : i32, i32, i32
  }
  func.func @transform_4(%arg0: i32, %arg1: i32) -> (i32, i32) {
    %c0_i32 = arith.constant 0 : i32
    return %arg0, %arg1 : i32, i32
  }
}

</mosaic_0001>

<llo_original>
// kernel: tpu_custom_call.1
$region0: #{tpu_custom_call.1}
  #allocation0 [shape = 'u32[]', space=smem, size = 0x4, offset = 0x4, fixed_abs, tag = 'smem constant byte address 0x4 - core index']
  #allocation1 [shape = 'u32[72,128]{1,0:T(1,128)}', space=vmem, size = 0x9000, scoped, tag = 'internal scratch']
  %s0 = inlined_call_operand.hbm [shape: f32[2,32], index: 0, kind: input, shape index: {}]
  %s1 = inlined_call_operand.hbm [shape: f32[2,32], index: 1, kind: input, shape index: {}]
  %s2 = inlined_call_operand.hbm [shape: f32[2,8,32], index: 2, kind: input, shape index: {}]
  %s3 = inlined_call_operand.hbm [shape: f32[2,8,32], index: 3, kind: input, shape index: {}]
  %s4 = inlined_call_operand.hbm [shape: f32[2,8], index: 4, kind: output, shape index: {}]
  %s5 = sld [smem:[#allocation0]]
  $region42: #{tpu_custom_call.1} parent=0
    _
  %s7 = ssub.s32 1, %s5
  %s8 = scalar_select 0, %s7, %s5
  $region1: #{tpu_custom_call.1} parent=0
    #allocation2 [shape = 'u8[1024]{0}', space=vmem, size = 0x400, scoped, tag = 'input window, operand 0, single buffered']
    #allocation3 [shape = 's32[1]{0}', space=sflag, size = 0x4, scoped, tag = 'scoped memory for tpu_custom_call.1']
    #allocation4 [shape = 's32[1]{0}', space=sflag, size = 0x4, scoped, tag = 'scoped memory for tpu_custom_call.1']
    #allocation5 [shape = 'u8[1024]{0}', space=vmem, size = 0x400, scoped, tag = 'input window, operand 1, single buffered']
    #allocation6 [shape = 's32[1]{0}', space=sflag, size = 0x4, scoped, tag = 'scoped memory for tpu_custom_call.1']
    #allocation7 [shape = 'u8[8192]{0}', space=vmem, size = 0x2000, scoped, tag = 'input window, operand 2, single buffered']
    #allocation8 [shape = 'u8[8192]{0}', space=vmem, size = 0x2000, scoped, tag = 'input window, operand 3, single buffered']
    #allocation9 [shape = 's32[1]{0}', space=sflag, size = 0x4, scoped, tag = 'scoped memory for tpu_custom_call.1']
    #allocation10 [shape = 'u8[1024]{0}', space=vmem, size = 0x400, scoped, tag = 'output window, operand 0, single buffered']
    %9 = vsyncpa [#allocation3], 0
    %10 = vsyncpa [#allocation6], 0
    %11 = vsyncpa [#allocation9], 0
    %12 = vsyncpa [#allocation4], 0
    // Predicated region
    $region2: #{tpu_custom_call.1} parent=1 // pred_check
      _
    $region3: #{tpu_custom_call.1} parent=1 // pred_check_branch
      %14 = sbr.rel (0) target = $region5
    $region4: #{tpu_custom_call.1} parent=1 // pred_region
      %16 = vsyncadd [#allocation3], 0
      %s18 = sshll.u32 %s0, 4
      %s19 = int_to_ptr.hbm [resolvable:$true] %s18
      %s20 = sshll.u32 [#allocation2], 4
      %s21 = int_to_ptr.vmem [resolvable:$true] %s20
      %23 = dma.hbm_to_vmem [thread:$0]  %s19, 32, %s21, [#allocation3]
    $region5: #{tpu_custom_call.1} parent=1 // pred_fallthru
      _
    // Predicated region
    $region6: #{tpu_custom_call.1} parent=1 // pred_check
      _
    $region7: #{tpu_custom_call.1} parent=1 // pred_check_branch
      %25 = sbr.rel (0) target = $region9
    $region8: #{tpu_custom_call.1} parent=1 // pred_region
      %27 = vsyncadd [#allocation6], 0
      %s29 = sshll.u32 %s1, 4
      %s30 = int_to_ptr.hbm [resolvable:$true] %s29
      %s31 = sshll.u32 [#allocation5], 4
      %s32 = int_to_ptr.vmem [resolvable:$true] %s31
      %34 = dma.hbm_to_vmem [thread:$0]  %s30, 32, %s32, [#allocation6]
    $region9: #{tpu_custom_call.1} parent=1 // pred_fallthru
      _
    // Predicated region
    $region10: #{tpu_custom_call.1} parent=1 // pred_check
      _
    $region11: #{tpu_custom_call.1} parent=1 // pred_check_branch
      %36 = sbr.rel (0) target = $region13
    $region12: #{tpu_custom_call.1} parent=1 // pred_region
      %38 = vsyncadd [#allocation6], 0
      %s39 = sshll.u32 %s2, 4
      %s40 = int_to_ptr.hbm [resolvable:$true] %s39
      %s41 = sshll.u32 [#allocation7], 4
      %s42 = int_to_ptr.vmem [resolvable:$true] %s41
      %47 = dma.hbm_to_vmem [thread:$0]  %s40, 256, %s42, [#allocation6], 128, 128, 8
    $region13: #{tpu_custom_call.1} parent=1 // pred_fallthru
      _
    // Predicated region
    $region14: #{tpu_custom_call.1} parent=1 // pred_check
      _
    $region15: #{tpu_custom_call.1} parent=1 // pred_check_branch
      %49 = sbr.rel (0) target = $region17
    $region16: #{tpu_custom_call.1} parent=1 // pred_region
      %51 = vsyncadd [#allocation9], 0
      %s52 = sshll.u32 %s3, 4
      %s53 = int_to_ptr.hbm [resolvable:$true] %s52
      %s54 = sshll.u32 [#allocation8], 4
      %s55 = int_to_ptr.vmem [resolvable:$true] %s54
      %60 = dma.hbm_to_vmem [thread:$0]  %s53, 256, %s55, [#allocation9], 128, 128, 8
    $region17: #{tpu_custom_call.1} parent=1 // pred_fallthru
      _
    // Predicated region
    $region18: #{tpu_custom_call.1} parent=1 // pred_check
      _
    $region19: #{tpu_custom_call.1} parent=1 // pred_check_branch
      %62 = sbr.rel (0) target = $region21
    $region20: #{tpu_custom_call.1} parent=1 // pred_region
      %64 = dma.done [#allocation3], 32
    $region21: #{tpu_custom_call.1} parent=1 // pred_fallthru
      _
    // Predicated region
    $region22: #{tpu_custom_call.1} parent=1 // pred_check
      _
    $region23: #{tpu_custom_call.1} parent=1 // pred_check_branch
      %66 = sbr.rel (0) target = $region25
    $region24: #{tpu_custom_call.1} parent=1 // pred_region
      %68 = dma.done [#allocation6], 32
    $region25: #{tpu_custom_call.1} parent=1 // pred_fallthru
      _
    // Predicated region
    $region26: #{tpu_custom_call.1} parent=1 // pred_check
      _
    $region27: #{tpu_custom_call.1} parent=1 // pred_check_branch
      %70 = sbr.rel (0) target = $region29
    $region28: #{tpu_custom_call.1} parent=1 // pred_region
      %72 = dma.done [#allocation6], 256
    $region29: #{tpu_custom_call.1} parent=1 // pred_fallthru
      _
    // Predicated region
    $region30: #{tpu_custom_call.1} parent=1 // pred_check
      _
    $region31: #{tpu_custom_call.1} parent=1 // pred_check_branch
      %74 = sbr.rel (0) target = $region33
    $region32: #{tpu_custom_call.1} parent=1 // pred_region
      %76 = dma.done [#allocation9], 256
    $region33: #{tpu_custom_call.1} parent=1 // pred_fallthru
      _
    %v77 = vld [vmem:[#allocation7] sm:$0xff]
    %v78 = vld [vmem:[#allocation7 + $0x8] sm:$0xff]
    %v79 = vld [vmem:[#allocation8] sm:$0xff]
    %v80 = vld [vmem:[#allocation8 + $0x8] sm:$0xff]
    %v81 = vld [vmem:[#allocation2] sm:$0x3]
    %v83 = vrot.slane %v81, 1
    %v84 = vld [vmem:[#allocation5] sm:$0x3]
    %v86 = vrot.slane %v84, 1
    %v87 = vperm.slane %v81, 0
    %v88 = vperm.slane %v83, 0
    %v91 = vmul.f32 %v77, %v87
    %v92 = vmul.f32 %v78, %v88
    %vm93 = vcmask 261120
    %v94 = vsel %vm93, %v91, 0.0
    %95 = vadd.xlane.f32.xlu0 %v94
    %v96 = vpop.xlane.xlu0 %95
    %v97 = vsel %vm93, %v92, 0.0
    %98 = vadd.xlane.f32.xlu0 %v97
    %v99 = vpop.xlane.xlu0 %98
    %v100 = vperm.slane %v84, 0
    %v101 = vperm.slane %v86, 0
    %v104 = vmul.f32 %v79, %v100
    %v105 = vmul.f32 %v80, %v101
    %v106 = vsel %vm93, %v104, 0.0
    %107 = vadd.xlane.f32.xlu0 %v106
    %v108 = vpop.xlane.xlu0 %107
    %v109 = vsel %vm93, %v105, 0.0
    %110 = vadd.xlane.f32.xlu0 %v109
    %v111 = vpop.xlane.xlu0 %110
    %v112 = vadd.f32 %v96, %v108
    %v113 = vadd.f32 %v99, %v111
    %v114 = vmul.f32 %v112, 0.125
    %v115 = vmul.f32 %v113, 0.125
    %v118 = vlaneseq
    %v119 = vand.u32 %v118, 127
    %v120 = vperm.slane %v114, %v119
    %v121 = vperm.slane %v115, %v119
    %vm122 = vcmask 1041409
    %v123 = vsel %vm122, %v121, %v120
    %vm125 = vcmask 58368
    %126 = vst.msk [vmem:[#allocation10] sm:$0x3] %vm125, %v123
    // Predicated region
    $region34: #{tpu_custom_call.1} parent=1 // pred_check
      _
    $region35: #{tpu_custom_call.1} parent=1 // pred_check_branch
      %128 = sbr.rel (0) target = $region37
    $region36: #{tpu_custom_call.1} parent=1 // pred_region
      %130 = vsyncadd [#allocation4], 0
      %s132 = sshll.u32 [#allocation10], 4
      %s133 = int_to_ptr.vmem [resolvable:$true] %s132
      %s134 = sshll.u32 %s4, 4
      %s135 = int_to_ptr.hbm [resolvable:$true] %s134
      %137 = dma.vmem_to_hbm [thread:$0]  %s133, 32, %s135, [#allocation4]
    $region37: #{tpu_custom_call.1} parent=1 // pred_fallthru
      _
    // Predicated region
    $region38: #{tpu_custom_call.1} parent=1 // pred_check
      _
    $region39: #{tpu_custom_call.1} parent=1 // pred_check_branch
      %139 = sbr.rel (0) target = $region41
    $region40: #{tpu_custom_call.1} parent=1 // pred_region
      %141 = dma.done [#allocation4], 32
    $region41: #{tpu_custom_call.1} parent=1 // pred_fallthru
      _
    %142 = vsyncpa [#allocation3], 1
    %143 = vsyncpa [#allocation6], 1
    %144 = vsyncpa [#allocation9], 1
    %145 = vsyncpa [#allocation4], 1

</llo_original>
